<compile_context>
chip_gen: v7x
topology: tpu7x:2x2x1
jax: 0.10.0
libtpu: 0.0.40
codegen_flags: <defaults>
</compile_context>

<pallas_src>
import jax
import jax.numpy as jnp
from jax.experimental import pallas as pl
from jax.experimental.pallas import tpu as pltpu


def permute_linear_kernel(x_ref, w_ref, b_ref, o_ref):
    # x_ref: (B, C, L)    float32, VMEM  -- original (un-permuted) input
    # w_ref: (OUT*C,)     float32, SMEM  -- Linear weight, flattened, read as scalars
    # b_ref: (OUT,)       float32, SMEM  -- Linear bias, read as scalars
    # o_ref: (B, L, OUT)  float32, VMEM  -- v3 in the reference layout
    #
    # Folded math (no swapaxes, no matmul):
    #   v1[b, l, c]    = x[b, c, l]
    #   v2[b, l, o]    = sum_c v1[b, l, c] * w[o, c] + bias[o]
    #   v3[b, l, o]    = v2[b, l, o] - v1[b, l, o]            (requires OUT == C)
    #   o_ref[b, l, o] = sum_c w[o, c] * x[b, c, l] + bias[o] - x[b, o, l]
    C = x_ref.shape[1]
    OUT = b_ref.shape[0]

    # Single vector load; slice lane-dense (B, L) rows in-register.
    xb = x_ref[...]

    cols = []
    for o in range(OUT):                           # OUT == 2, statically unrolled
        acc = xb[:, 0, :] * w_ref[o * C + 0] + b_ref[o]
        for c in range(1, C):
            acc = acc + xb[:, c, :] * w_ref[o * C + c]
        # subtract v1 (which in this orientation is just x row o)
        cols.append(acc - xb[:, o, :])

    # Single combined store in the reference (B, L, OUT) layout.
    o_ref[...] = jnp.stack(cols, axis=-1)


def model_forward(x1, weight, bias):
    B, C, L = x1.shape
    OUT, IN = weight.shape
    assert IN == C, f"Linear in_features ({IN}) must match permuted feature dim ({C})"
    # v3 = v2 - v1 is only well-defined elementwise when OUT == C (true here: 2 == 2).
    assert OUT == C, "v3 = v2 - v1 requires out_features == in_features"

    # Advisory cost hint: multiply-adds + bias + subtract per output element.
    flops = B * L * OUT * (2 * C + 2)
    bytes_accessed = 4 * (B * C * L + OUT * C + OUT + B * L * OUT)

    return pl.pallas_call(
        permute_linear_kernel,
        out_shape=jax.ShapeDtypeStruct((B, L, OUT), jnp.float32),
        in_specs=[
            pl.BlockSpec(memory_space=pltpu.MemorySpace.VMEM),   # x1
            pl.BlockSpec(memory_space=pltpu.MemorySpace.SMEM),   # weight (flat scalars)
            pl.BlockSpec(memory_space=pltpu.MemorySpace.SMEM),   # bias   (scalars)
        ],
        out_specs=pl.BlockSpec(memory_space=pltpu.MemorySpace.VMEM),
        cost_estimate=pl.CostEstimate(
            flops=flops, transcendentals=0, bytes_accessed=bytes_accessed),
    )(x1, weight.reshape(-1), bias)


if __name__ == "__main__":
    key = jax.random.PRNGKey(0)
    kx, kw, kb = jax.random.split(key, 3)

    # Shapes implied by the module: x1 ~ (1, 2, 2), Linear(2, 2)
    x1 = jax.random.normal(kx, (1, 2, 2), dtype=jnp.float32)
    # PyTorch-like init: U(-1/sqrt(in), 1/sqrt(in)) with in = 2
    bound = 1.0 / jnp.sqrt(2.0)
    weight = jax.random.uniform(kw, (2, 2), minval=-bound, maxval=bound,
                                dtype=jnp.float32)
    bias = jax.random.uniform(kb, (2,), minval=-bound, maxval=bound,
                              dtype=jnp.float32)

    out = model_forward(x1, weight, bias)
    jax.block_until_ready(out)

    # Pure-JAX reference of the well-defined part of the forward pass (v3).
    v1 = jnp.swapaxes(x1, 1, 2)
    v2 = v1 @ weight.T + bias
    v3_ref = v2 - v1
    assert out.shape == v3_ref.shape
    assert jnp.allclose(out, v3_ref, atol=1e-5, rtol=1e-5)

    print("KERNEL_OK")
</pallas_src>

<mosaic_0001>
module attributes {stable_mosaic.version = 11 : i64} {
  func.func @permute_linear_kernel(%arg0: memref<1x2x2xf32, #tpu.memory_space<vmem>>, %arg1: memref<4xf32, #tpu.memory_space<smem>>, %arg2: memref<2xf32, #tpu.memory_space<smem>>, %arg3: memref<1x2x2xf32, #tpu.memory_space<vmem>>) attributes {dimension_semantics = [], scalar_prefetch = 0 : i64, scratch_operands = 0 : i64, tpu.core_type = #tpu.core_type<tc>} {
    %c0 = arith.constant 0 : index
    %c0_0 = arith.constant 0 : index
    %c0_1 = arith.constant 0 : index
    %0 = vector.load %arg0[%c0, %c0_0, %c0_1] : memref<1x2x2xf32, #tpu.memory_space<vmem>>, vector<1x2x2xf32>
    %1 = vector.extract_strided_slice %0 {offsets = [0, 0, 0], sizes = [1, 1, 2], strides = [1, 1, 1]} : vector<1x2x2xf32> to vector<1x1x2xf32>
    %2 = vector.shape_cast %1 : vector<1x1x2xf32> to vector<1x2xf32>
    %c0_2 = arith.constant 0 : index
    %3 = memref.load %arg1[%c0_2] : memref<4xf32, #tpu.memory_space<smem>>
    %4 = vector.broadcast %3 : f32 to vector<1x2xf32>
    %5 = arith.mulf %2, %4 : vector<1x2xf32>
    %c0_3 = arith.constant 0 : index
    %6 = memref.load %arg2[%c0_3] : memref<2xf32, #tpu.memory_space<smem>>
    %7 = vector.broadcast %6 : f32 to vector<1x2xf32>
    %8 = arith.addf %5, %7 : vector<1x2xf32>
    %9 = vector.extract_strided_slice %0 {offsets = [0, 1, 0], sizes = [1, 1, 2], strides = [1, 1, 1]} : vector<1x2x2xf32> to vector<1x1x2xf32>
    %10 = vector.shape_cast %9 : vector<1x1x2xf32> to vector<1x2xf32>
    %c1 = arith.constant 1 : index
    %11 = memref.load %arg1[%c1] : memref<4xf32, #tpu.memory_space<smem>>
    %12 = vector.broadcast %11 : f32 to vector<1x2xf32>
    %13 = arith.mulf %10, %12 : vector<1x2xf32>
    %14 = arith.addf %8, %13 : vector<1x2xf32>
    %15 = vector.extract_strided_slice %0 {offsets = [0, 0, 0], sizes = [1, 1, 2], strides = [1, 1, 1]} : vector<1x2x2xf32> to vector<1x1x2xf32>
    %16 = vector.shape_cast %15 : vector<1x1x2xf32> to vector<1x2xf32>
    %17 = arith.subf %14, %16 : vector<1x2xf32>
    %18 = vector.extract_strided_slice %0 {offsets = [0, 0, 0], sizes = [1, 1, 2], strides = [1, 1, 1]} : vector<1x2x2xf32> to vector<1x1x2xf32>
    %19 = vector.shape_cast %18 : vector<1x1x2xf32> to vector<1x2xf32>
    %c2 = arith.constant 2 : index
    %20 = memref.load %arg1[%c2] : memref<4xf32, #tpu.memory_space<smem>>
    %21 = vector.broadcast %20 : f32 to vector<1x2xf32>
    %22 = arith.mulf %19, %21 : vector<1x2xf32>
    %c1_4 = arith.constant 1 : index
    %23 = memref.load %arg2[%c1_4] : memref<2xf32, #tpu.memory_space<smem>>
    %24 = vector.broadcast %23 : f32 to vector<1x2xf32>
    %25 = arith.addf %22, %24 : vector<1x2xf32>
    %26 = vector.extract_strided_slice %0 {offsets = [0, 1, 0], sizes = [1, 1, 2], strides = [1, 1, 1]} : vector<1x2x2xf32> to vector<1x1x2xf32>
    %27 = vector.shape_cast %26 : vector<1x1x2xf32> to vector<1x2xf32>
    %c3 = arith.constant 3 : index
    %28 = memref.load %arg1[%c3] : memref<4xf32, #tpu.memory_space<smem>>
    %29 = vector.broadcast %28 : f32 to vector<1x2xf32>
    %30 = arith.mulf %27, %29 : vector<1x2xf32>
    %31 = arith.addf %25, %30 : vector<1x2xf32>
    %32 = vector.extract_strided_slice %0 {offsets = [0, 1, 0], sizes = [1, 1, 2], strides = [1, 1, 1]} : vector<1x2x2xf32> to vector<1x1x2xf32>
    %33 = vector.shape_cast %32 : vector<1x1x2xf32> to vector<1x2xf32>
    %34 = arith.subf %31, %33 : vector<1x2xf32>
    %35 = vector.shape_cast %17 : vector<1x2xf32> to vector<1x2x1xf32>
    %36 = vector.shape_cast %34 : vector<1x2xf32> to vector<1x2x1xf32>
    %37 = tpu.concatenate %35, %36 in 2 : vector<1x2x1xf32>, vector<1x2x1xf32> -> vector<1x2x2xf32>
    %c0_5 = arith.constant 0 : index
    %c0_6 = arith.constant 0 : index
    %c0_7 = arith.constant 0 : index
    %38 = vector.load %arg3[%c0_5, %c0_6, %c0_7] : memref<1x2x2xf32, #tpu.memory_space<vmem>>, vector<1x2x2xf32>
    tpu.vector_store %arg3[%c0_5, %c0_6, %c0_7], %37 {strides = array<i32>} : memref<1x2x2xf32, #tpu.memory_space<vmem>>, vector<1x2x2xf32>,
    return
  }
}

</mosaic_0001>

<llo_original>
// kernel: tpu_custom_call.1
$region0: #{tpu_custom_call.1}
  #allocation0 [shape = 'u32[]', space=smem, size = 0x4, offset = 0x4, fixed_abs, tag = 'smem constant byte address 0x4 - core index']
  #allocation1 [shape = 'u32[144,128]{1,0:T(1,128)}', space=vmem, size = 0x12000, scoped, tag = 'internal scratch']
  %s0 = inlined_call_operand.hbm [shape: f32[1,2,2], index: 0, kind: input, shape index: {}]
  %s1 = inlined_call_operand.vmem [shape: f32[4], index: 1, kind: input, shape index: {}]
  %s2 = inlined_call_operand.vmem [shape: f32[2], index: 2, kind: input, shape index: {}]
  %s3 = inlined_call_operand.hbm [shape: f32[1,2,2], index: 3, kind: output, shape index: {}]
  %s4 = sld [smem:[#allocation0]]
  $region34: #{tpu_custom_call.1} parent=0
    _
  %s6 = ssub.s32 1, %s4
  %s7 = scalar_select 0, %s6, %s4
  $region1: #{tpu_custom_call.1} parent=0
    #allocation2 [shape = 'u8[1024]{0}', space=vmem, size = 0x400, scoped, tag = 'input window, operand 0, single buffered']
    #allocation3 [shape = 's32[1]{0}', space=sflag, size = 0x4, scoped, tag = 'scoped memory for tpu_custom_call.1']
    #allocation4 [shape = 's32[1]{0}', space=sflag, size = 0x4, scoped, tag = 'scoped memory for tpu_custom_call.1']
    #allocation5 [shape = 's32[1]{0}', space=sflag, size = 0x4, scoped, tag = 'scoped memory for tpu_custom_call.1']
    #allocation6 [shape = 'u8[512]{0}', space=smem, size = 0x200, scoped, tag = 'input window, operand 1, single buffered']
    #allocation7 [shape = 'u8[512]{0}', space=smem, size = 0x200, scoped, tag = 'input window, operand 2, single buffered']
    #allocation8 [shape = 's32[1]{0}', space=sflag, size = 0x4, scoped, tag = 'scoped memory for tpu_custom_call.1']
    #allocation9 [shape = 'u8[1024]{0}', space=vmem, size = 0x400, scoped, tag = 'output window, operand 0, single buffered']
    %8 = vsyncpa [#allocation3], 0
    %9 = vsyncpa [#allocation5], 0
    %10 = vsyncpa [#allocation8], 0
    %11 = vsyncpa [#allocation4], 0
    // Predicated region
    $region2: #{tpu_custom_call.1} parent=1 // pred_check
      _
    $region3: #{tpu_custom_call.1} parent=1 // pred_check_branch
      %13 = sbr.rel (0) target = $region5
    $region4: #{tpu_custom_call.1} parent=1 // pred_region
      %s15 = ssub.s32 32, 32
      %16 = vsyncadd [#allocation3], %s15
      %s18 = sshll.u32 [#allocation2], 4
      %s19 = int_to_ptr.vmem [resolvable:$true] %s18
      %21 = dma.hbm_to_vmem [thread:$0]  %s0, 32, %s19, [#allocation3]
    $region5: #{tpu_custom_call.1} parent=1 // pred_fallthru
      _
    // Predicated region
    $region6: #{tpu_custom_call.1} parent=1 // pred_check
      _
    $region7: #{tpu_custom_call.1} parent=1 // pred_check_branch
      %23 = sbr.rel (0) target = $region9
    $region8: #{tpu_custom_call.1} parent=1 // pred_region
      %s25 = ssub.s32 16, 16
      %26 = vsyncadd [#allocation5], %s25
      %s28 = sshll.u32 %s1, 4
      %s29 = int_to_ptr.vmem [resolvable:$true] %s28
      %31 = dma.vmem_to_smem %s29, 16, [#allocation6], [#allocation5]
    $region9: #{tpu_custom_call.1} parent=1 // pred_fallthru
      _
    // Predicated region
    $region10: #{tpu_custom_call.1} parent=1 // pred_check
      _
    $region11: #{tpu_custom_call.1} parent=1 // pred_check_branch
      %33 = sbr.rel (0) target = $region13
    $region12: #{tpu_custom_call.1} parent=1 // pred_region
      %s35 = ssub.s32 16, 16
      %36 = vsyncadd [#allocation8], %s35
      %s38 = sshll.u32 %s2, 4
      %s39 = int_to_ptr.vmem [resolvable:$true] %s38
      %41 = dma.vmem_to_smem %s39, 16, [#allocation7], [#allocation8]
    $region13: #{tpu_custom_call.1} parent=1 // pred_fallthru
      _
    // Predicated region
    $region14: #{tpu_custom_call.1} parent=1 // pred_check
      _
    $region15: #{tpu_custom_call.1} parent=1 // pred_check_branch
      %43 = sbr.rel (0) target = $region17
    $region16: #{tpu_custom_call.1} parent=1 // pred_region
      %44 = dma.done [#allocation3], 32
    $region17: #{tpu_custom_call.1} parent=1 // pred_fallthru
      _
    // Predicated region
    $region18: #{tpu_custom_call.1} parent=1 // pred_check
      _
    $region19: #{tpu_custom_call.1} parent=1 // pred_check_branch
      %46 = sbr.rel (0) target = $region21
    $region20: #{tpu_custom_call.1} parent=1 // pred_region
      %47 = dma.done [#allocation5], 16
    $region21: #{tpu_custom_call.1} parent=1 // pred_fallthru
      _
    // Predicated region
    $region22: #{tpu_custom_call.1} parent=1 // pred_check
      _
    $region23: #{tpu_custom_call.1} parent=1 // pred_check_branch
      %49 = sbr.rel (0) target = $region25
    $region24: #{tpu_custom_call.1} parent=1 // pred_region
      %50 = dma.done [#allocation8], 16
    $region25: #{tpu_custom_call.1} parent=1 // pred_fallthru
      _
    %51 = sfence
    %v52 = vld [vmem:[#allocation2] sm:$0x3]
    %s53 = sld [smem:[#allocation6]]
    %v54 = vstv %s53
    %v55 = vmul.f32 %v52, %v54
    %s56 = sld [smem:[#allocation7]]
    %v57 = vstv %s56
    %v58 = vadd.f32 %v55, %v57
    %s59 = sld [smem:[#allocation6 + $0x1]]
    %v60 = vstv %s59
    %v61 = vmul.f32 %v52, %v60
    %v63 = vrot.slane %v61, 1
    %v65 = vadd.f32 %v58, %v63
    %v66 = vsub.f32 %v65, %v52
    %s67 = sld [smem:[#allocation6 + $0x2]]
    %v68 = vstv %s67
    %v69 = vmul.f32 %v52, %v68
    %s70 = sld [smem:[#allocation7 + $0x1]]
    %v71 = vstv %s70
    %v72 = vadd.f32 %v69, %v71
    %s73 = sld [smem:[#allocation6 + $0x3]]
    %v74 = vstv %s73
    %v75 = vmul.f32 %v52, %v74
    %v77 = vrot.slane %v75, 1
    %v79 = vadd.f32 %v72, %v77
    %v81 = vrot.slane %v52, 1
    %v83 = vsub.f32 %v79, %v81
    %v84 = vlaneseq
    %v85 = vshrl.u32 %v84, 7
    %v86 = vsub.s32 0, %v85
    %v87 = vrot.slane %v66, %v86
    %89 = vbcast.lane.b32.xlu0 %v87, 256
    %v90 = vpop.permute.xlu0 %89
    %v91 = vlaneseq
    %v92 = vshrl.u32 %v91, 7
    %v93 = vsub.s32 0, %v92
    %v94 = vrot.slane %v83, %v93
    %96 = vbcast.lane.b32.xlu0 %v94, 256
    %v97 = vpop.permute.xlu0 %96
    %vm98 = vcmask 7168
    %v99 = vsel %vm98, %v90, %v97
    %vm100 = vcmask 9216
    %101 = vst.msk [vmem:[#allocation9] sm:$0x3] %vm100, %v99
    // Predicated region
    $region26: #{tpu_custom_call.1} parent=1 // pred_check
      _
    $region27: #{tpu_custom_call.1} parent=1 // pred_check_branch
      %103 = sbr.rel (0) target = $region29
    $region28: #{tpu_custom_call.1} parent=1 // pred_region
      %s105 = ssub.s32 32, 32
      %106 = vsyncadd [#allocation4], %s105
      %s108 = sshll.u32 [#allocation9], 4
      %s109 = int_to_ptr.vmem [resolvable:$true] %s108
      %111 = dma.vmem_to_hbm [thread:$0]  %s109, 32, %s3, [#allocation4]
    $region29: #{tpu_custom_call.1} parent=1 // pred_fallthru
      _
    // Predicated region
    $region30: #{tpu_custom_call.1} parent=1 // pred_check
      _
    $region31: #{tpu_custom_call.1} parent=1 // pred_check_branch
      %113 = sbr.rel (0) target = $region33
    $region32: #{tpu_custom_call.1} parent=1 // pred_region
      %114 = dma.done [#allocation4], 32
    $region33: #{tpu_custom_call.1} parent=1 // pred_fallthru
      _
    %115 = vsyncpa [#allocation3], 1
    %116 = vsyncpa [#allocation4], 1
    %117 = vsyncpa [#allocation5], 1
    %118 = vsyncpa [#allocation8], 1

</llo_original>
